<compile_context>
chip_gen: v7x
topology: tpu7x:2x2x1
jax: 0.10.0
libtpu: 0.0.40
codegen_flags: <defaults>
</compile_context>

<pallas_src>
import jax
import jax.numpy as jnp
from jax.experimental import pallas as pl
from jax.experimental.pallas import tpu as pltpu


def _round_up(n, m):
    return ((n + m - 1) // m) * m


def _mlp_ood_kernel(x_ref, w1_ref, b1_ref, w2_ref, b2_ref, wu_ref, bu_ref,
                    pred_ref, unc_ref):
    # fc1 + bias + ReLU (f32 throughout; MXU accumulates in f32).
    h = jnp.dot(x_ref[...], w1_ref[...], preferred_element_type=jnp.float32)
    h = jnp.maximum(h + b1_ref[...], 0.0)
    # TODO(synk): dropout (p=0.3) is identity here (inference / is_dropout=False);
    # a training-mode variant would use pltpu.prng_seed + pltpu.stateful_bernoulli.

    # Two small head matmuls sharing the resident LHS `h`.  Both contractions are
    # tiny (32-wide) and the kernel is HBM-bound, so this costs nothing while
    # keeping every output exactly as wide as the real data.
    pred_ref[...] = (jnp.dot(h, w2_ref[...], preferred_element_type=jnp.float32)
                     + b2_ref[...]).astype(pred_ref.dtype)
    unc_ref[...] = (jnp.dot(h, wu_ref[...], preferred_element_type=jnp.float32)
                    + bu_ref[...]).astype(unc_ref.dtype)


def mlp_ood_confid_forward(x, params, *, tb=4096):
    """x: any shape whose trailing dims flatten to in_features (PyTorch .view(-1, D))."""
    w1 = params["w1"].astype(jnp.float32)                      # (in_features, hidden)
    b1 = params["b1"].reshape(1, -1).astype(jnp.float32)       # (1, hidden)
    w2 = params["w2"].astype(jnp.float32)                      # (hidden, num_classes)
    b2 = params["b2"].reshape(1, -1).astype(jnp.float32)       # (1, num_classes)
    wu = params["wu"].astype(jnp.float32)                      # (hidden, 1)
    bu = params["bu"].reshape(1, -1).astype(jnp.float32)       # (1, 1)

    in_features, hidden = w1.shape
    num_classes = w2.shape[1]

    x2d = x.reshape(-1, in_features).astype(jnp.float32)
    B = x2d.shape[0]

    # Batch tile: multiple of 8 sublanes, capped so the grid has >= 2 steps when B
    # allows it (v7x two-TensorCore sharding of the "parallel" axis).
    tb_eff = max(8, min(_round_up(tb, 8), _round_up(pl.cdiv(B, 2), 8)))
    grid = (pl.cdiv(B, tb_eff),)

    pred, unc = pl.pallas_call(
        _mlp_ood_kernel,
        out_shape=(
            jax.ShapeDtypeStruct((B, num_classes), jnp.float32),
            jax.ShapeDtypeStruct((B, 1), jnp.float32),
        ),
        grid=grid,
        in_specs=[
            pl.BlockSpec((tb_eff, in_features), lambda i: (i, 0)),   # x tile (streamed)
            pl.BlockSpec((in_features, hidden), lambda i: (0, 0)),   # w1 (VMEM-resident)
            pl.BlockSpec((1, hidden), lambda i: (0, 0)),             # b1
            pl.BlockSpec((hidden, num_classes), lambda i: (0, 0)),   # w2
            pl.BlockSpec((1, num_classes), lambda i: (0, 0)),        # b2
            pl.BlockSpec((hidden, 1), lambda i: (0, 0)),             # wu
            pl.BlockSpec((1, 1), lambda i: (0, 0)),                  # bu
        ],
        out_specs=(
            pl.BlockSpec((tb_eff, num_classes), lambda i: (i, 0)),   # pred (exact width)
            pl.BlockSpec((tb_eff, 1), lambda i: (i, 0)),             # uncertainty
        ),
        compiler_params=pltpu.CompilerParams(
            dimension_semantics=("parallel",)),
    )(x2d, w1, b1, w2, b2, wu, bu)

    return pred, unc


def _reference_forward_f32(x, params):
    """Pure-f32 reference (PyTorch semantics), full-precision matmuls."""
    hp = jax.lax.Precision.HIGHEST
    x2d = x.reshape(-1, params["w1"].shape[0]).astype(jnp.float32)
    h = jnp.maximum(jnp.dot(x2d, params["w1"], precision=hp) + params["b1"], 0.0)
    pred = jnp.dot(h, params["w2"], precision=hp) + params["b2"]
    unc = jnp.dot(h, params["wu"], precision=hp) + params["bu"]
    return pred, unc


def _init_params(key, in_features, hidden, num_classes):
    ks = jax.random.split(key, 6)

    def u(k, shape, fan_in):
        bound = 1.0 / (fan_in ** 0.5)
        return jax.random.uniform(k, shape, jnp.float32, -bound, bound)

    return {
        "w1": u(ks[0], (in_features, hidden), in_features),
        "b1": u(ks[1], (hidden,), in_features),
        "w2": u(ks[2], (hidden, num_classes), hidden),
        "b2": u(ks[3], (num_classes,), hidden),
        "wu": u(ks[4], (hidden, 1), hidden),
        "bu": u(ks[5], (1,), hidden),
    }


if __name__ == "__main__":
    key = jax.random.PRNGKey(0)
    k_x, k_p = jax.random.split(key)

    # config: input_size = 64 (= 4*16 flattened), hidden_size = 32, num_classes = 10
    BATCH, C, L = 2, 4, 16
    IN_FEATURES = C * L          # 64
    HIDDEN = 32
    NUM_CLASSES = 10

    x = jax.random.normal(k_x, (BATCH, C, L), jnp.float32)   # .view(-1, 64) -> (2, 64)
    params = _init_params(k_p, IN_FEATURES, HIDDEN, NUM_CLASSES)

    pred, unc = mlp_ood_confid_forward(x, params)
    jax.block_until_ready((pred, unc))

    assert pred.shape == (BATCH, NUM_CLASSES) and unc.shape == (BATCH, 1)

    # f32 kernel path: compare against the full-precision f32 reference.
    pred_f, unc_f = _reference_forward_f32(x, params)
    assert jnp.allclose(pred, pred_f, atol=5e-3, rtol=5e-3), (
        jnp.max(jnp.abs(pred - pred_f)))
    assert jnp.allclose(unc, unc_f, atol=5e-3, rtol=5e-3), (
        jnp.max(jnp.abs(unc - unc_f)))

    print("KERNEL_OK")
</pallas_src>

<mosaic_0001>
module attributes {stable_mosaic.version = 11 : i64} {
  func.func @_mlp_ood_kernel(%arg0: i32, %arg1: memref<8x64xf32, #tpu.memory_space<vmem>>, %arg2: memref<64x32xf32, #tpu.memory_space<vmem>>, %arg3: memref<1x32xf32, #tpu.memory_space<vmem>>, %arg4: memref<32x10xf32, #tpu.memory_space<vmem>>, %arg5: memref<1x10xf32, #tpu.memory_space<vmem>>, %arg6: memref<32x1xf32, #tpu.memory_space<vmem>>, %arg7: memref<1x1xf32, #tpu.memory_space<vmem>>, %arg8: memref<8x10xf32, #tpu.memory_space<vmem>>, %arg9: memref<8x1xf32, #tpu.memory_space<vmem>>) attributes {dimension_semantics = [#tpu.dimension_semantics<parallel>], iteration_bounds = array<i64: 1>, scalar_prefetch = 0 : i64, scratch_operands = 0 : i64, tpu.core_type = #tpu.core_type<tc>, window_params = [{transform_indices = @transform_0, window_bounds = array<i64: 8, 64>}, {pipeline_mode = #tpu.pipeline_mode<synchronous>, transform_indices = @transform_1, window_bounds = array<i64: 64, 32>}, {pipeline_mode = #tpu.pipeline_mode<synchronous>, transform_indices = @transform_2, window_bounds = array<i64: 1, 32>}, {pipeline_mode = #tpu.pipeline_mode<synchronous>, transform_indices = @transform_3, window_bounds = array<i64: 32, 10>}, {pipeline_mode = #tpu.pipeline_mode<synchronous>, transform_indices = @transform_4, window_bounds = array<i64: 1, 10>}, {pipeline_mode = #tpu.pipeline_mode<synchronous>, transform_indices = @transform_5, window_bounds = array<i64: 32, 1>}, {pipeline_mode = #tpu.pipeline_mode<synchronous>, transform_indices = @transform_6, window_bounds = array<i64: 1, 1>}, {transform_indices = @transform_7, window_bounds = array<i64: 8, 10>}, {transform_indices = @transform_8, window_bounds = array<i64: 8, 1>}]} {
    %c0 = arith.constant 0 : index
    %c0_0 = arith.constant 0 : index
    %0 = vector.load %arg1[%c0, %c0_0] : memref<8x64xf32, #tpu.memory_space<vmem>>, vector<8x64xf32>
    %c0_1 = arith.constant 0 : index
    %c0_2 = arith.constant 0 : index
    %1 = vector.load %arg2[%c0_1, %c0_2] : memref<64x32xf32, #tpu.memory_space<vmem>>, vector<64x32xf32>
    %cst = arith.constant dense<0.000000e+00> : vector<8x32xf32>
    %2 = tpu.matmul %0, %1, %cst {dimension_numbers = #tpu.dot_dimension_numbers<[1], [0], [0], [1], [0, 0, 1, 1], [], []>} : vector<8x64xf32>, vector<64x32xf32>, vector<8x32xf32> -> vector<8x32xf32>
    %c0_3 = arith.constant 0 : index
    %c0_4 = arith.constant 0 : index
    %3 = vector.load %arg3[%c0_3, %c0_4] : memref<1x32xf32, #tpu.memory_space<vmem>>, vector<1x32xf32>
    %4 = vector.broadcast %3 : vector<1x32xf32> to vector<8x32xf32>
    %5 = arith.addf %2, %4 : vector<8x32xf32>
    %cst_5 = arith.constant 0.000000e+00 : f32
    %6 = vector.broadcast %cst_5 : f32 to vector<8x32xf32>
    %7 = arith.maximumf %5, %6 : vector<8x32xf32>
    %c0_6 = arith.constant 0 : index
    %c0_7 = arith.constant 0 : index
    %8 = vector.load %arg4[%c0_6, %c0_7] : memref<32x10xf32, #tpu.memory_space<vmem>>, vector<32x10xf32>
    %cst_8 = arith.constant dense<0.000000e+00> : vector<8x10xf32>
    %9 = tpu.matmul %7, %8, %cst_8 {dimension_numbers = #tpu.dot_dimension_numbers<[1], [0], [0], [1], [0, 0, 1, 1], [], []>} : vector<8x32xf32>, vector<32x10xf32>, vector<8x10xf32> -> vector<8x10xf32>
    %c0_9 = arith.constant 0 : index
    %c0_10 = arith.constant 0 : index
    %10 = vector.load %arg5[%c0_9, %c0_10] : memref<1x10xf32, #tpu.memory_space<vmem>>, vector<1x10xf32>
    %11 = vector.broadcast %10 : vector<1x10xf32> to vector<8x10xf32>
    %12 = arith.addf %9, %11 : vector<8x10xf32>
    %c0_11 = arith.constant 0 : index
    %c0_12 = arith.constant 0 : index
    %13 = vector.load %arg8[%c0_11, %c0_12] : memref<8x10xf32, #tpu.memory_space<vmem>>, vector<8x10xf32>
    tpu.vector_store %arg8[%c0_11, %c0_12], %12 {strides = array<i32>} : memref<8x10xf32, #tpu.memory_space<vmem>>, vector<8x10xf32>,
    %c0_13 = arith.constant 0 : index
    %c0_14 = arith.constant 0 : index
    %14 = vector.load %arg6[%c0_13, %c0_14] : memref<32x1xf32, #tpu.memory_space<vmem>>, vector<32x1xf32>
    %cst_15 = arith.constant dense<0.000000e+00> : vector<8x1xf32>
    %15 = tpu.matmul %7, %14, %cst_15 {dimension_numbers = #tpu.dot_dimension_numbers<[1], [0], [0], [1], [0, 0, 1, 1], [], []>} : vector<8x32xf32>, vector<32x1xf32>, vector<8x1xf32> -> vector<8x1xf32>
    %c0_16 = arith.constant 0 : index
    %c0_17 = arith.constant 0 : index
    %16 = vector.load %arg7[%c0_16, %c0_17] : memref<1x1xf32, #tpu.memory_space<vmem>>, vector<1x1xf32>
    %17 = vector.broadcast %16 : vector<1x1xf32> to vector<8x1xf32>
    %18 = arith.addf %15, %17 : vector<8x1xf32>
    %c0_18 = arith.constant 0 : index
    %c0_19 = arith.constant 0 : index
    %19 = vector.load %arg9[%c0_18, %c0_19] : memref<8x1xf32, #tpu.memory_space<vmem>>, vector<8x1xf32>
    tpu.vector_store %arg9[%c0_18, %c0_19], %18 {strides = array<i32>} : memref<8x1xf32, #tpu.memory_space<vmem>>, vector<8x1xf32>,
    return
  }
  func.func @transform_0(%arg0: i32) -> (i32, i32) {
    %c0_i32 = arith.constant 0 : i32
    %c0_i32_0 = arith.constant 0 : i32
    return %arg0, %c0_i32 : i32, i32
  }
  func.func @transform_1(%arg0: i32) -> (i32, i32) {
    %c0_i32 = arith.constant 0 : i32
    %c0_i32_0 = arith.constant 0 : i32
    %c0_i32_1 = arith.constant 0 : i32
    return %c0_i32, %c0_i32_0 : i32, i32
  }
  func.func @transform_2(%arg0: i32) -> (i32, i32) {
    %c0_i32 = arith.constant 0 : i32
    %c0_i32_0 = arith.constant 0 : i32
    %c0_i32_1 = arith.constant 0 : i32
    return %c0_i32, %c0_i32_0 : i32, i32
  }
  func.func @transform_3(%arg0: i32) -> (i32, i32) {
    %c0_i32 = arith.constant 0 : i32
    %c0_i32_0 = arith.constant 0 : i32
    %c0_i32_1 = arith.constant 0 : i32
    return %c0_i32, %c0_i32_0 : i32, i32
  }
  func.func @transform_4(%arg0: i32) -> (i32, i32) {
    %c0_i32 = arith.constant 0 : i32
    %c0_i32_0 = arith.constant 0 : i32
    %c0_i32_1 = arith.constant 0 : i32
    return %c0_i32, %c0_i32_0 : i32, i32
  }
  func.func @transform_5(%arg0: i32) -> (i32, i32) {
    %c0_i32 = arith.constant 0 : i32
    %c0_i32_0 = arith.constant 0 : i32
    %c0_i32_1 = arith.constant 0 : i32
    return %c0_i32, %c0_i32_0 : i32, i32
  }
  func.func @transform_6(%arg0: i32) -> (i32, i32) {
    %c0_i32 = arith.constant 0 : i32
    %c0_i32_0 = arith.constant 0 : i32
    %c0_i32_1 = arith.constant 0 : i32
    return %c0_i32, %c0_i32_0 : i32, i32
  }
  func.func @transform_7(%arg0: i32) -> (i32, i32) {
    %c0_i32 = arith.constant 0 : i32
    %c0_i32_0 = arith.constant 0 : i32
    return %arg0, %c0_i32 : i32, i32
  }
  func.func @transform_8(%arg0: i32) -> (i32, i32) {
    %c0_i32 = arith.constant 0 : i32
    %c0_i32_0 = arith.constant 0 : i32
    return %arg0, %c0_i32 : i32, i32
  }
}

</mosaic_0001>

<llo_original>
// kernel: tpu_custom_call.1
$region0: #{tpu_custom_call.1}
  #allocation0 [shape = 'u32[]', space=smem, size = 0x4, offset = 0x4, fixed_abs, tag = 'smem constant byte address 0x4 - core index']
  #allocation1 [shape = 'u32[144,128]{1,0:T(1,128)}', space=vmem, size = 0x12000, scoped, tag = 'internal scratch']
  #allocation2 [shape = 'f32[1,1]{1,0:T(1,128)S(1)}', space=vmem, size = 0x200, scoped, tag = 'scoped memory for tpu_custom_call.1']
  %s0 = inlined_call_operand.vmem [shape: f32[2,64], index: 0, kind: input, shape index: {}]
  %s1 = inlined_call_operand.vmem [shape: f32[64,32], index: 1, kind: input, shape index: {}]
  %s2 = inlined_call_operand.vmem [shape: f32[1,32], index: 2, kind: input, shape index: {}]
  %s3 = inlined_call_operand.vmem [shape: f32[32,10], index: 3, kind: input, shape index: {}]
  %s4 = inlined_call_operand.vmem [shape: f32[1,10], index: 4, kind: input, shape index: {}]
  %s5 = inlined_call_operand.vmem [shape: f32[32,1], index: 5, kind: input, shape index: {}]
  %s6 = inlined_call_operand.<no memory space> [shape: f32[1,1], index: 6, kind: input, shape index: {}]
  %s7 = inlined_call_operand.hbm [shape: f32[2,10], index: 7, kind: output, shape index: {0}]
  %s8 = inlined_call_operand.vmem [shape: f32[2,1], index: 8, kind: output, shape index: {1}]
  %9 = xla_tuple %s7, %s8
  %s10 = sld [smem:[#allocation0]]
  $region76: #{tpu_custom_call.1} parent=0
    _
  %s12 = ssub.s32 1, %s10
  %s13 = scalar_select 0, %s12, %s10
  %v14 = vstv %s6
  %15 = vst [vmem:[#allocation2] sm:$0x1] %v14
  $region1: #{tpu_custom_call.1} parent=0
    #allocation3 [shape = 'u8[4096]{0}', space=vmem, size = 0x1000, scoped, tag = 'output window, operand 0, single buffered']
    #allocation4 [shape = 's32[1]{0}', space=sflag, size = 0x4, scoped, tag = 'scoped memory for tpu_custom_call.1']
    #allocation5 [shape = 'u8[4096]{0}', space=vmem, size = 0x1000, scoped, tag = 'output window, operand 1, single buffered']
    %16 = vsyncpa [#allocation4], 0
    // Predicated region
    $region2: #{tpu_custom_call.1} parent=1 // pred_check
      _
    $region3: #{tpu_custom_call.1} parent=1 // pred_check_branch
      %18 = sbr.rel (0) target = $region5
    $region4: #{tpu_custom_call.1} parent=1 // pred_region
      _
    $region5: #{tpu_custom_call.1} parent=1 // pred_fallthru
      _
    // Predicated region
    $region6: #{tpu_custom_call.1} parent=1 // pred_check
      _
    $region7: #{tpu_custom_call.1} parent=1 // pred_check_branch
      %20 = sbr.rel (0) target = $region9
    $region8: #{tpu_custom_call.1} parent=1 // pred_region
      _
    $region9: #{tpu_custom_call.1} parent=1 // pred_fallthru
      _
    // Predicated region
    $region10: #{tpu_custom_call.1} parent=1 // pred_check
      _
    $region11: #{tpu_custom_call.1} parent=1 // pred_check_branch
      %22 = sbr.rel (0) target = $region13
    $region12: #{tpu_custom_call.1} parent=1 // pred_region
      _
    $region13: #{tpu_custom_call.1} parent=1 // pred_fallthru
      _
    // Predicated region
    $region14: #{tpu_custom_call.1} parent=1 // pred_check
      _
    $region15: #{tpu_custom_call.1} parent=1 // pred_check_branch
      %24 = sbr.rel (0) target = $region17
    $region16: #{tpu_custom_call.1} parent=1 // pred_region
      _
    $region17: #{tpu_custom_call.1} parent=1 // pred_fallthru
      _
    // Predicated region
    $region18: #{tpu_custom_call.1} parent=1 // pred_check
      _
    $region19: #{tpu_custom_call.1} parent=1 // pred_check_branch
      %26 = sbr.rel (0) target = $region21
    $region20: #{tpu_custom_call.1} parent=1 // pred_region
      _
    $region21: #{tpu_custom_call.1} parent=1 // pred_fallthru
      _
    // Predicated region
    $region22: #{tpu_custom_call.1} parent=1 // pred_check
      _
    $region23: #{tpu_custom_call.1} parent=1 // pred_check_branch
      %28 = sbr.rel (0) target = $region25
    $region24: #{tpu_custom_call.1} parent=1 // pred_region
      _
    $region25: #{tpu_custom_call.1} parent=1 // pred_fallthru
      _
    // Predicated region
    $region26: #{tpu_custom_call.1} parent=1 // pred_check
      _
    $region27: #{tpu_custom_call.1} parent=1 // pred_check_branch
      %30 = sbr.rel (0) target = $region29
    $region28: #{tpu_custom_call.1} parent=1 // pred_region
      _
    $region29: #{tpu_custom_call.1} parent=1 // pred_fallthru
      _
    %v31 = vld [vmem:[%s0] sm:$0xff]
    %v32 = vld [vmem:[%s1] sm:$0xff]
    %v33 = vld [vmem:[%s1 + $0x8] sm:$0xff]
    %v34 = vld [vmem:[%s1 + $0x10] sm:$0xff]
    %v35 = vld [vmem:[%s1 + $0x18] sm:$0xff]
    %v36 = vld [vmem:[%s1 + $0x20] sm:$0xff]
    %v37 = vld [vmem:[%s1 + $0x28] sm:$0xff]
    %v38 = vld [vmem:[%s1 + $0x30] sm:$0xff]
    %v39 = vld [vmem:[%s1 + $0x38] sm:$0xff]
    %v40 = vld [vmem:[%s2] sm:$0x1]
    %v42 = vlaneseq
    %v43 = vshrl.u32 %v42, 7
    %v44 = vsub.s32 0, %v43
    %v45 = vrot.slane %v40, %v44
    %vm47 = vcmask 523264
    %v49 = vsel %vm47, %v31, 0
    %51 = vmatprep.subr.mxu0 0.0
    %52 = vmatpush1.msra.mxu0 %v32
    %53 = vmatprep.subr.mxu0 0.0
    %54 = vmatpush1.msra.mxu0 %v33
    %55 = vmatprep.subr.mxu0 0.0
    %56 = vmatpush1.msra.mxu0 %v34
    %57 = vmatprep.subr.mxu0 0.0
    %58 = vmatpush1.msra.mxu0 %v35
    %59 = vmatprep.subr.mxu0 0.0
    %60 = vmatpush1.msra.mxu0 %v36
    %61 = vmatprep.subr.mxu0 0.0
    %62 = vmatpush1.msra.mxu0 %v37
    %63 = vmatprep.subr.mxu0 0.0
    %64 = vmatpush1.msra.mxu0 %v38
    %65 = vmatprep.subr.mxu0 0.0
    %66 = vmatpush1.msra.mxu0 %v39
    %67 = vmatprep.subr.mxu0 0.0
    %68 = vmatpush1.msra.mxu0 0.0
    %69 = vmatprep.subr.mxu0 0.0
    %70 = vmatpush1.msra.mxu0 0.0
    %71 = vmatprep.subr.mxu0 0.0
    %72 = vmatpush1.msra.mxu0 0.0
    %73 = vmatprep.subr.mxu0 0.0
    %74 = vmatpush1.msra.mxu0 0.0
    %75 = vmatprep.subr.mxu0 0.0
    %76 = vmatpush1.msra.mxu0 0.0
    %77 = vmatprep.subr.mxu0 0.0
    %78 = vmatpush1.msra.mxu0 0.0
    %79 = vmatprep.subr.mxu0 0.0
    %80 = vmatpush1.msra.mxu0 0.0
    %81 = vmatprep.subr.mxu0 0.0
    %82 = vmatpush1.msra.mxu0 0.0
    %83 = vmatprep.subr.mxu0 0.0
    %84 = vmatpush1.msra.mxu0 0.0
    %85 = vmatprep.subr.mxu0 0.0
    %86 = vmatpush1.msra.mxu0 0.0
    %87 = vmatprep.subr.mxu0 0.0
    %88 = vmatpush1.msra.mxu0 0.0
    %89 = vmatprep.subr.mxu0 0.0
    %90 = vmatpush1.msra.mxu0 0.0
    %91 = vmatprep.subr.mxu0 0.0
    %92 = vmatpush1.msra.mxu0 0.0
    %93 = vmatprep.subr.mxu0 0.0
    %94 = vmatpush1.msra.mxu0 0.0
    %95 = vmatprep.subr.mxu0 0.0
    %96 = vmatpush1.msra.mxu0 0.0
    %97 = vmatprep.subr.mxu0 0.0
    %98 = vmatpush1.msra.mxu0 0.0
    %99 = vmatprep.subr.mxu0 0.0
    %100 = vmatpush1.msra.mxu0 0.0
    %101 = vmatprep.subr.mxu0 0.0
    %102 = vmatpush1.msra.mxu0 0.0
    %103 = vmatprep.subr.mxu0 0.0
    %104 = vmatpush1.msra.mxu0 0.0
    %105 = vmatprep.subr.mxu0 0.0
    %106 = vmatpush1.msra.mxu0 0.0
    %107 = vmatprep.subr.mxu0 0.0
    %108 = vmatpush1.msra.mxu0 0.0
    %109 = vmatprep.subr.mxu0 0.0
    %110 = vmatpush1.msra.mxu0 0.0
    %111 = vmatprep.subr.mxu0 0.0
    %112 = vmatpush1.msra.mxu0 0.0
    %113 = vmatprep.subr.mxu0 0.0
    %114 = vmatpush1.msra.mxu0 0.0
    %115 = vmatprep.mubr.f32.mxu0 0.0
    %116 = vmatmul.mubr.f32.gmra.mrb[0].mxu0 %v49
    %v117 = vpop.f32.mrb[0].mxu0
    %v118 = vadd.f32 %v45, %v117
    %v119 = vpop.f32.mrb[0].mxu0
    %120 = vdwg.mxu0
    %v121 = vmax.f32 %v118, 0.0
    %v122 = vld [vmem:[%s3] sm:$0xff]
    %v123 = vld [vmem:[%s3 + $0x8] sm:$0xff]
    %v124 = vld [vmem:[%s3 + $0x10] sm:$0xff]
    %v125 = vld [vmem:[%s3 + $0x18] sm:$0xff]
    %v126 = vld [vmem:[%s4] sm:$0x1]
    %v128 = vlaneseq
    %v129 = vshrl.u32 %v128, 7
    %v130 = vsub.s32 0, %v129
    %v131 = vrot.slane %v126, %v130
    %vm133 = vcmask 261120
    %v135 = vsel %vm133, %v121, 0
    %137 = vmatprep.subr.mxu0 0.0
    %138 = vmatpush1.msra.mxu0 %v122
    %139 = vmatprep.subr.mxu0 0.0
    %140 = vmatpush1.msra.mxu0 %v123
    %141 = vmatprep.subr.mxu0 0.0
    %142 = vmatpush1.msra.mxu0 %v124
    %143 = vmatprep.subr.mxu0 0.0
    %144 = vmatpush1.msra.mxu0 %v125
    %145 = vmatprep.subr.mxu0 0.0
    %146 = vmatpush1.msra.mxu0 0.0
    %147 = vmatprep.subr.mxu0 0.0
    %148 = vmatpush1.msra.mxu0 0.0
    %149 = vmatprep.subr.mxu0 0.0
    %150 = vmatpush1.msra.mxu0 0.0
    %151 = vmatprep.subr.mxu0 0.0
    %152 = vmatpush1.msra.mxu0 0.0
    %153 = vmatprep.subr.mxu0 0.0
    %154 = vmatpush1.msra.mxu0 0.0
    %155 = vmatprep.subr.mxu0 0.0
    %156 = vmatpush1.msra.mxu0 0.0
    %157 = vmatprep.subr.mxu0 0.0
    %158 = vmatpush1.msra.mxu0 0.0
    %159 = vmatprep.subr.mxu0 0.0
    %160 = vmatpush1.msra.mxu0 0.0
    %161 = vmatprep.subr.mxu0 0.0
    %162 = vmatpush1.msra.mxu0 0.0
    %163 = vmatprep.subr.mxu0 0.0
    %164 = vmatpush1.msra.mxu0 0.0
    %165 = vmatprep.subr.mxu0 0.0
    %166 = vmatpush1.msra.mxu0 0.0
    %167 = vmatprep.subr.mxu0 0.0
    %168 = vmatpush1.msra.mxu0 0.0
    %169 = vmatprep.subr.mxu0 0.0
    %170 = vmatpush1.msra.mxu0 0.0
    %171 = vmatprep.subr.mxu0 0.0
    %172 = vmatpush1.msra.mxu0 0.0
    %173 = vmatprep.subr.mxu0 0.0
    %174 = vmatpush1.msra.mxu0 0.0
    %175 = vmatprep.subr.mxu0 0.0
    %176 = vmatpush1.msra.mxu0 0.0
    %177 = vmatprep.subr.mxu0 0.0
    %178 = vmatpush1.msra.mxu0 0.0
    %179 = vmatprep.subr.mxu0 0.0
    %180 = vmatpush1.msra.mxu0 0.0
    %181 = vmatprep.subr.mxu0 0.0
    %182 = vmatpush1.msra.mxu0 0.0
    %183 = vmatprep.subr.mxu0 0.0
    %184 = vmatpush1.msra.mxu0 0.0
    %185 = vmatprep.subr.mxu0 0.0
    %186 = vmatpush1.msra.mxu0 0.0
    %187 = vmatprep.subr.mxu0 0.0
    %188 = vmatpush1.msra.mxu0 0.0
    %189 = vmatprep.subr.mxu0 0.0
    %190 = vmatpush1.msra.mxu0 0.0
    %191 = vmatprep.subr.mxu0 0.0
    %192 = vmatpush1.msra.mxu0 0.0
    %193 = vmatprep.subr.mxu0 0.0
    %194 = vmatpush1.msra.mxu0 0.0
    %195 = vmatprep.subr.mxu0 0.0
    %196 = vmatpush1.msra.mxu0 0.0
    %197 = vmatprep.subr.mxu0 0.0
    %198 = vmatpush1.msra.mxu0 0.0
    %199 = vmatprep.subr.mxu0 0.0
    %200 = vmatpush1.msra.mxu0 0.0
    %201 = vmatprep.mubr.f32.mxu0 0.0
    %202 = vmatmul.mubr.f32.gmra.mrb[0].mxu0 %v135
    %v203 = vpop.f32.mrb[0].mxu0
    %v204 = vadd.f32 %v131, %v203
    %v205 = vpop.f32.mrb[0].mxu0
    %206 = vdwg.mxu0
    %vm207 = vcmask 80896
    %208 = vst.msk [vmem:[#allocation3] sm:$0xff] %vm207, %v204
    %v209 = vld [vmem:[%s5] sm:$0xff]
    %v210 = vld [vmem:[%s5 + $0x8] sm:$0xff]
    %v211 = vld [vmem:[%s5 + $0x10] sm:$0xff]
    %v212 = vld [vmem:[%s5 + $0x18] sm:$0xff]
    %v213 = vld [vmem:[#allocation2] sm:$0x1]
    %v215 = vlaneseq
    %v216 = vshrl.u32 %v215, 7
    %v217 = vsub.s32 0, %v216
    %v218 = vrot.slane %v213, %v217
    %220 = vmatprep.subr.mxu0 0.0
    %221 = vmatpush1.msra.mxu0 %v209
    %222 = vmatprep.subr.mxu0 0.0
    %223 = vmatpush1.msra.mxu0 %v210
    %224 = vmatprep.subr.mxu0 0.0
    %225 = vmatpush1.msra.mxu0 %v211
    %226 = vmatprep.subr.mxu0 0.0
    %227 = vmatpush1.msra.mxu0 %v212
    %228 = vmatprep.subr.mxu0 0.0
    %229 = vmatpush1.msra.mxu0 0.0
    %230 = vmatprep.subr.mxu0 0.0
    %231 = vmatpush1.msra.mxu0 0.0
    %232 = vmatprep.subr.mxu0 0.0
    %233 = vmatpush1.msra.mxu0 0.0
    %234 = vmatprep.subr.mxu0 0.0
    %235 = vmatpush1.msra.mxu0 0.0
    %236 = vmatprep.subr.mxu0 0.0
    %237 = vmatpush1.msra.mxu0 0.0
    %238 = vmatprep.subr.mxu0 0.0
    %239 = vmatpush1.msra.mxu0 0.0
    %240 = vmatprep.subr.mxu0 0.0
    %241 = vmatpush1.msra.mxu0 0.0
    %242 = vmatprep.subr.mxu0 0.0
    %243 = vmatpush1.msra.mxu0 0.0
    %244 = vmatprep.subr.mxu0 0.0
    %245 = vmatpush1.msra.mxu0 0.0
    %246 = vmatprep.subr.mxu0 0.0
    %247 = vmatpush1.msra.mxu0 0.0
    %248 = vmatprep.subr.mxu0 0.0
    %249 = vmatpush1.msra.mxu0 0.0
    %250 = vmatprep.subr.mxu0 0.0
    %251 = vmatpush1.msra.mxu0 0.0
    %252 = vmatprep.subr.mxu0 0.0
    %253 = vmatpush1.msra.mxu0 0.0
    %254 = vmatprep.subr.mxu0 0.0
    %255 = vmatpush1.msra.mxu0 0.0
    %256 = vmatprep.subr.mxu0 0.0
    %257 = vmatpush1.msra.mxu0 0.0
    %258 = vmatprep.subr.mxu0 0.0
    %259 = vmatpush1.msra.mxu0 0.0
    %260 = vmatprep.subr.mxu0 0.0
    %261 = vmatpush1.msra.mxu0 0.0
    %262 = vmatprep.subr.mxu0 0.0
    %263 = vmatpush1.msra.mxu0 0.0
    %264 = vmatprep.subr.mxu0 0.0
    %265 = vmatpush1.msra.mxu0 0.0
    %266 = vmatprep.subr.mxu0 0.0
    %267 = vmatpush1.msra.mxu0 0.0
    %268 = vmatprep.subr.mxu0 0.0
    %269 = vmatpush1.msra.mxu0 0.0
    %270 = vmatprep.subr.mxu0 0.0
    %271 = vmatpush1.msra.mxu0 0.0
    %272 = vmatprep.subr.mxu0 0.0
    %273 = vmatpush1.msra.mxu0 0.0
    %274 = vmatprep.subr.mxu0 0.0
    %275 = vmatpush1.msra.mxu0 0.0
    %276 = vmatprep.subr.mxu0 0.0
    %277 = vmatpush1.msra.mxu0 0.0
    %278 = vmatprep.subr.mxu0 0.0
    %279 = vmatpush1.msra.mxu0 0.0
    %280 = vmatprep.subr.mxu0 0.0
    %281 = vmatpush1.msra.mxu0 0.0
    %282 = vmatprep.subr.mxu0 0.0
    %283 = vmatpush1.msra.mxu0 0.0
    %284 = vmatprep.mubr.f32.mxu0 0.0
    %285 = vmatmul.mubr.f32.gmra.mrb[0].mxu0 %v135
    %v286 = vpop.f32.mrb[0].mxu0
    %v287 = vadd.f32 %v218, %v286
    %v288 = vpop.f32.mrb[0].mxu0
    %289 = vdwg.mxu0
    %vm290 = vcmask 7168
    %291 = vst.msk [vmem:[#allocation5] sm:$0xff] %vm290, %v287
    // Predicated region
    $region30: #{tpu_custom_call.1} parent=1 // pred_check
      _
    $region31: #{tpu_custom_call.1} parent=1 // pred_check_branch
      %293 = sbr.rel (0) target = $region33
    $region32: #{tpu_custom_call.1} parent=1 // pred_region
      %s295 = ssub.s32 128, 32
      %296 = vsyncadd [#allocation4], %s295
      %s297 = sshll.u32 [#allocation3], 4
      %s298 = int_to_ptr.vmem [resolvable:$true] %s297
      %303 = dma.vmem_to_hbm [thread:$0]  %s298, 32, %s7, [#allocation4], 32, 32, 2
    $region33: #{tpu_custom_call.1} parent=1 // pred_fallthru
      _
    // Predicated region
    $region34: #{tpu_custom_call.1} parent=1 // pred_check
      _
    $region35: #{tpu_custom_call.1} parent=1 // pred_check_branch
      %305 = sbr.rel (0) target = $region37
    $region36: #{tpu_custom_call.1} parent=1 // pred_region
      // Predicated region
      $region38: #{tpu_custom_call.1} parent=36 // pred_check
        _
      $region39: #{tpu_custom_call.1} parent=36 // pred_check_branch
        %307 = sbr.rel (0) target = $region41
      $region40: #{tpu_custom_call.1} parent=36 // pred_region
        // Predicated region
        $region42: #{tpu_custom_call.1} parent=40 // pred_check
          _
        $region43: #{tpu_custom_call.1} parent=40 // pred_check_branch
          %309 = sbr.rel target = $region45
        $region44: #{tpu_custom_call.1} parent=40 // pred_region
          // Predicated region
          $region57: #{tpu_custom_call.1} parent=44 // pred_check
            _
          $region58: #{tpu_custom_call.1} parent=44 // pred_check_branch
            %324 = sbr.rel (0) target = $region60
          $region59: #{tpu_custom_call.1} parent=44 // pred_region
            loop: start=0, step=1, limit=1
            $region61: #{tpu_custom_call.1} parent=59 // loop_pre_header
              _
            $region62: #{tpu_custom_call.1} parent=59 // loop_header
              %s327 = sphi 0, %s331
              %p328 = scmp.ge.s32.totalorder %s327, 1
              %s332 = sphi [#allocation5], [#allocation5]
              %s333 = sphi %s8, %s8
            $region63: #{tpu_custom_call.1} parent=59 // loop_header_branch
              %330 = sbr.rel (%p328) target = $region67
            $region64: #{tpu_custom_call.1} parent=59 // loop_body
              %v334 = vld [vmem:[%s332] sm:$0x3]
              %335 = vst [vmem:[%s333] sm:$0x3] %v334
            $region65: #{tpu_custom_call.1} parent=59 // loop_footer
              %s331 = sadd.s32 1, %s327
            $region66: #{tpu_custom_call.1} parent=59 // loop_footer_branch
              %326 = sbr.rel target = $region62
            $region67: #{tpu_custom_call.1} parent=59 // loop_exit
              _
          $region60: #{tpu_custom_call.1} parent=44 // pred_fallthru
            _
        $region45: #{tpu_custom_call.1} parent=40 // pred_fallthru
          _
        // Predicated region
        $region46: #{tpu_custom_call.1} parent=40 // pred_check
          _
        $region47: #{tpu_custom_call.1} parent=40 // pred_check_branch
          %311 = sbr.rel (0) target = $region49
        $region48: #{tpu_custom_call.1} parent=40 // pred_region
          loop: start=0, step=1, limit=1
          $region50: #{tpu_custom_call.1} parent=48 // loop_pre_header
            _
          $region51: #{tpu_custom_call.1} parent=48 // loop_header
            %s314 = sphi 0, %s318
            %p315 = scmp.ge.s32.totalorder %s314, 1
            %s319 = sphi [#allocation5], [#allocation5]
            %s320 = sphi %s8, %s8
          $region52: #{tpu_custom_call.1} parent=48 // loop_header_branch
            %317 = sbr.rel (%p315) target = $region56
          $region53: #{tpu_custom_call.1} parent=48 // loop_body
            %v321 = vld [vmem:[%s319] sm:$0x3]
            %322 = vst [vmem:[%s320] sm:$0x3] %v321
          $region54: #{tpu_custom_call.1} parent=48 // loop_footer
            %s318 = sadd.s32 1, %s314
          $region55: #{tpu_custom_call.1} parent=48 // loop_footer_branch
            %313 = sbr.rel target = $region51
          $region56: #{tpu_custom_call.1} parent=48 // loop_exit
            _
        $region49: #{tpu_custom_call.1} parent=40 // pred_fallthru
          _
      $region41: #{tpu_custom_call.1} parent=36 // pred_fallthru
        _
      %336 = vnop
    $region37: #{tpu_custom_call.1} parent=1 // pred_fallthru
      _
    // Predicated region
    $region68: #{tpu_custom_call.1} parent=1 // pred_check
      _
    $region69: #{tpu_custom_call.1} parent=1 // pred_check_branch
      %338 = sbr.rel (0) target = $region71
    $region70: #{tpu_custom_call.1} parent=1 // pred_region
      %339 = dma.done [#allocation4], 128
    $region71: #{tpu_custom_call.1} parent=1 // pred_fallthru
      _
    // Predicated region
    $region72: #{tpu_custom_call.1} parent=1 // pred_check
      _
    $region73: #{tpu_custom_call.1} parent=1 // pred_check_branch
      %341 = sbr.rel (0) target = $region75
    $region74: #{tpu_custom_call.1} parent=1 // pred_region
      _
    $region75: #{tpu_custom_call.1} parent=1 // pred_fallthru
      _
    %342 = vsyncpa [#allocation4], 1

</llo_original>
